<compile_context>
chip_gen: v7x
topology: tpu7x:2x2x1
jax: 0.10.0
libtpu: 0.0.40
codegen_flags: <defaults>
</compile_context>

<pallas_src>
import functools
import math

import jax
import jax.numpy as jnp
import numpy as np
from jax.experimental import pallas as pl
from jax.experimental.pallas import tpu as pltpu

_LANE = 128                    # lane width: last block dim multiple (or full dim)
_MAX_FOLDED_LANES = 8192       # cap on lane width when folding rows into lanes
_VMEM_LIMIT_BYTES = 48 << 20   # above the 16 MiB (v5e) / 32 MiB (v6e/v7x) scoped defaults


@functools.lru_cache(maxsize=1)
def _target_block_bytes() -> int:
    """Per-generation HBM block target (amortizes the ~0.35 us per-grid-step cost)."""
    try:
        kind = jax.devices()[0].device_kind.lower()
    except Exception:  # pragma: no cover - defensive
        kind = ""
    # Older / slower-HBM generations: 2 MiB blocks are already <10% overhead and
    # keep VMEM pressure low.  v6e/v7x fast HBM wants bigger blocks.
    if any(tag in kind for tag in ("v2", "v3", "v4", "v5")):
        return 2 << 20
    return 8 << 20


def _sublane(dtype) -> int:
    """Dtype-aware sublane multiple: f32 -> 8, bf16 -> 16, int8/fp8 -> 32."""
    return max(8, 32 // jnp.dtype(dtype).itemsize)


def _dropout_mc_kernel(x_ref, m_ref, o_ref):
    """Hot path: one fused broadcast multiply.

    m_ref is an f32 (1, L) row carrying mask * 1/(1-p); the multiply happens in
    f32 and is cast on store, so bf16 inputs keep full scale precision while the
    HBM traffic stays in the input dtype.
    """
    o_ref[...] = (x_ref[...].astype(jnp.float32) * m_ref[...]).astype(o_ref.dtype)


@jax.jit
def _dropout_mc_apply(x2d, mask_row):
    """Apply the pre-scaled mask row to a (rows, mask_len) slab.

    x2d:      (rows, mask_len)  flattened input (mask broadcasts over rows)
    mask_row: (1, mask_len)     float32 Bernoulli mask * 1/(1-p)
    """
    rows, mask_len = x2d.shape                      # static at trace time
    itemsize = jnp.dtype(x2d.dtype).itemsize
    sublane = _sublane(x2d.dtype)

    # ---- last-dim handling: lane-fold narrow / unaligned feature dims instead
    # of padding (valid because the mask is identical for every row).
    if mask_len % _LANE == 0:
        k = 1
    else:
        k = math.lcm(mask_len, _LANE) // mask_len
        if rows % k != 0 or k * mask_len > _MAX_FOLDED_LANES:
            # Fall back: block last dim == full array dim (legal); the lane tail
            # uses a few masked vst.msk stores but there is no pad round trip.
            k = 1
    if k > 1:
        x2d = x2d.reshape(rows // k, k * mask_len)
        mask_row = jnp.tile(mask_row, (1, k))
    rows_eff, lanes = x2d.shape

    # ---- row tiling: biggest block hitting the per-generation byte target.
    tile_rows = _target_block_bytes() // max(1, lanes * itemsize)
    tile_rows = max(sublane, (tile_rows // sublane) * sublane)
    if rows_eff <= tile_rows:
        tile_rows = rows_eff        # block dim == full array dim: always legal
    grid = (pl.cdiv(rows_eff, tile_rows),)   # ragged final block handled by Pallas

    bytes_accessed = 2 * rows_eff * lanes * itemsize + lanes * 4
    out = pl.pallas_call(
        _dropout_mc_kernel,
        out_shape=jax.ShapeDtypeStruct((rows_eff, lanes), x2d.dtype),
        grid=grid,
        in_specs=[
            pl.BlockSpec((tile_rows, lanes), lambda i: (i, 0)),
            pl.BlockSpec((1, lanes), lambda i: (0, 0)),   # shared mask row
        ],
        out_specs=pl.BlockSpec((tile_rows, lanes), lambda i: (i, 0)),
        compiler_params=pltpu.CompilerParams(
            # Row tiles are fully independent -> shard across both TCs on v7x;
            # harmless (single-TC) on v5e/v6e.
            # TODO(synk): confirm on xprof that the "parallel" axis actually
            # shards across v7x's 2 TensorCores; otherwise move to core_map.
            dimension_semantics=("parallel",),
            vmem_limit_bytes=_VMEM_LIMIT_BYTES),
        cost_estimate=pl.CostEstimate(
            flops=rows_eff * lanes,
            transcendentals=0,
            bytes_accessed=bytes_accessed),
    )(x2d, mask_row)

    if k > 1:
        out = out.reshape(rows, mask_len)
    return out


class DropoutMC:
    """JAX/Pallas re-implementation of the PyTorch DropoutMC module (forward)."""

    def __init__(self, p: float, activate: bool = False, seed: int = 0):
        self.activate = activate
        self.p = p
        self.p_init = p
        self.batch_idx = 0
        self._key = jax.random.PRNGKey(seed)
        self.mask = None                 # "big" mask, sampled at batch_idx == 0
        self._mask_version = -1          # bumped every re-sample
        self._mask_row_cache = {}        # (shape, p, version) -> f32 (1, L) row

    # --- mask handling (mirrors _create_mask / _truncate_mask) -------------
    def _create_mask(self, x):
        if x.ndim == 3:
            mask_shape = (1, 1, 2048)
        elif x.ndim == 4:
            mask_shape = (1, 1, 256, 256)
        elif x.ndim == 2:
            mask_shape = (1, 2048)
        else:
            raise ValueError("DropoutMC only supports 2D/3D/4D inputs")
        # Split so any future re-sample (batch_idx reset) draws a FRESH mask,
        # matching the reference's independent Binomial draws.
        self._key, sub = jax.random.split(self._key)
        keep_prob = max(0.0, 1.0 - self.p)
        return jax.random.bernoulli(sub, keep_prob, mask_shape).astype(jnp.float32)

    def _truncate_mask(self, x, mask):
        slicers = tuple([slice(0, 1)] + [slice(0, s) for s in x.shape[1:]])
        return mask[slicers]

    def _flatten(self, x):
        """View x as (rows, mask_len) matching the mask broadcast semantics."""
        if x.ndim == 4:
            n, c, h, w = x.shape                  # NCHW: mask shared over N, C
            return x.reshape(n * c, h * w)
        if x.ndim == 3:
            n, t, d = x.shape                     # mask shared over N, T
            return x.reshape(n * t, d)
        if x.ndim == 2:
            return x                              # mask shared over N
        raise ValueError("DropoutMC only supports 2D/3D/4D inputs")

    def _mask_row(self, x):
        """Truncated mask flattened to (1, mask_len), pre-scaled by 1/(1-p), f32."""
        cache_key = (tuple(x.shape), float(self.p), self._mask_version)
        row = self._mask_row_cache.get(cache_key)
        if row is None:
            trunc = self._truncate_mask(x, self.mask)     # non-last dims are size 1
            flat = trunc.reshape(1, -1).astype(jnp.float32)
            if self.p >= 1.0:
                # Deviation: reference forward would give x*0/0 = NaN; we return
                # exact zeros (standard dropout semantics) instead.
                row = jnp.zeros_like(flat)
            else:
                row = flat * jnp.float32(1.0 / (1.0 - self.p))
            self._mask_row_cache[cache_key] = row
        return row

    # --- forward ------------------------------------------------------------
    def __call__(self, x):
        if self.batch_idx == 0:
            self.mask = self._create_mask(x)
            self._mask_version += 1
            self._mask_row_cache.clear()     # drop rows built from the old mask
        self.batch_idx += 1

        mask_row = self._mask_row(x)
        x2d = self._flatten(x)
        out2d = _dropout_mc_apply(x2d, mask_row)
        return out2d.reshape(x.shape)


if __name__ == "__main__":
    key = jax.random.PRNGKey(0)

    # ---- 4D NCHW branch: H*W = 256 is lane-aligned -> direct path. ---------
    x = jax.random.normal(key, (2, 4, 16, 16), dtype=jnp.float32)
    layer = DropoutMC(p=0.5, activate=True, seed=1234)
    out = jax.block_until_ready(layer(x))

    p = 0.5
    out_np = np.asarray(out)
    x_np = np.asarray(x)
    kept = out_np != 0.0                       # (N, C, H, W) boolean
    kept_hw = kept[0, 0]
    assert np.all(kept == kept_hw[None, None, :, :]), "mask not broadcast over N, C"
    expected = x_np * kept_hw[None, None, :, :].astype(np.float32) / (1.0 - p)
    np.testing.assert_allclose(out_np, expected, rtol=1e-6, atol=1e-6)

    # Mask is reused on subsequent calls (batch_idx > 0 path in PyTorch).
    out_again = jax.block_until_ready(layer(x))
    np.testing.assert_allclose(np.asarray(out_again), out_np, rtol=0, atol=0)

    # ---- 3D branch (D=32, not lane-aligned) -> lane-folding path (k=4). ----
    x3 = jax.random.normal(jax.random.PRNGKey(1), (2, 8, 32), dtype=jnp.float32)
    layer3 = DropoutMC(p=0.3, activate=True, seed=7)
    out3 = jax.block_until_ready(layer3(x3))
    kept3 = np.asarray(out3) != 0.0
    assert np.all(kept3 == kept3[0, 0][None, None, :]), "3D mask not broadcast over N, T"
    expected3 = np.asarray(x3) * kept3[0, 0][None, None, :].astype(np.float32) / (1.0 - 0.3)
    np.testing.assert_allclose(np.asarray(out3), expected3, rtol=1e-5, atol=1e-6)

    # ---- 2D branch (D=200, not lane-aligned, rows not foldable) ------------
    # Exercises the full-last-dim block path with tail-masked stores.
    x2 = jax.random.normal(jax.random.PRNGKey(2), (6, 200), dtype=jnp.float32)
    layer2 = DropoutMC(p=0.25, activate=True, seed=3)
    out2 = jax.block_until_ready(layer2(x2))
    kept2 = np.asarray(out2) != 0.0
    assert np.all(kept2 == kept2[0][None, :]), "2D mask not broadcast over N"
    expected2 = np.asarray(x2) * kept2[0][None, :].astype(np.float32) / (1.0 - 0.25)
    np.testing.assert_allclose(np.asarray(out2), expected2, rtol=1e-5, atol=1e-6)

    # ---- bf16 input: dtype-aware sublane + f32 mask-row precision path. ----
    xb = jax.random.normal(jax.random.PRNGKey(3), (2, 8, 32), dtype=jnp.bfloat16)
    layerb = DropoutMC(p=0.3, activate=True, seed=11)
    outb = jax.block_until_ready(layerb(xb))
    outb_f = np.asarray(outb, dtype=np.float32)
    keptb = outb_f != 0.0
    assert np.all(keptb == keptb[0, 0][None, None, :]), "bf16 mask not broadcast over N, T"
    expectedb = np.asarray(xb, dtype=np.float32) * keptb[0, 0][None, None, :] / (1.0 - 0.3)
    np.testing.assert_allclose(outb_f, expectedb, rtol=1e-2, atol=1e-3)

    print("KERNEL_OK")
</pallas_src>

<mosaic_0001>
module attributes {stable_mosaic.version = 11 : i64} {
  func.func @_dropout_mc_kernel(%arg0: i32, %arg1: memref<8x256xf32, #tpu.memory_space<vmem>>, %arg2: memref<1x256xf32, #tpu.memory_space<vmem>>, %arg3: memref<8x256xf32, #tpu.memory_space<vmem>>) attributes {dimension_semantics = [#tpu.dimension_semantics<parallel>], iteration_bounds = array<i64: 1>, scalar_prefetch = 0 : i64, scratch_operands = 0 : i64, tpu.core_type = #tpu.core_type<tc>, window_params = [{transform_indices = @transform_0, window_bounds = array<i64: 8, 256>}, {pipeline_mode = #tpu.pipeline_mode<synchronous>, transform_indices = @transform_1, window_bounds = array<i64: 1, 256>}, {transform_indices = @transform_2, window_bounds = array<i64: 8, 256>}]} {
    %c0 = arith.constant 0 : index
    %c0_0 = arith.constant 0 : index
    %0 = vector.load %arg1[%c0, %c0_0] : memref<8x256xf32, #tpu.memory_space<vmem>>, vector<8x256xf32>
    %c0_1 = arith.constant 0 : index
    %c0_2 = arith.constant 0 : index
    %1 = vector.load %arg2[%c0_1, %c0_2] : memref<1x256xf32, #tpu.memory_space<vmem>>, vector<1x256xf32>
    %2 = vector.broadcast %1 : vector<1x256xf32> to vector<8x256xf32>
    %3 = arith.mulf %0, %2 : vector<8x256xf32>
    %c0_3 = arith.constant 0 : index
    %c0_4 = arith.constant 0 : index
    %4 = vector.load %arg3[%c0_3, %c0_4] : memref<8x256xf32, #tpu.memory_space<vmem>>, vector<8x256xf32>
    tpu.vector_store %arg3[%c0_3, %c0_4], %3 {strides = array<i32>} : memref<8x256xf32, #tpu.memory_space<vmem>>, vector<8x256xf32>,
    return
  }
  func.func @transform_0(%arg0: i32) -> (i32, i32) {
    %c0_i32 = arith.constant 0 : i32
    %c0_i32_0 = arith.constant 0 : i32
    return %arg0, %c0_i32 : i32, i32
  }
  func.func @transform_1(%arg0: i32) -> (i32, i32) {
    %c0_i32 = arith.constant 0 : i32
    %c0_i32_0 = arith.constant 0 : i32
    %c0_i32_1 = arith.constant 0 : i32
    return %c0_i32, %c0_i32_0 : i32, i32
  }
  func.func @transform_2(%arg0: i32) -> (i32, i32) {
    %c0_i32 = arith.constant 0 : i32
    %c0_i32_0 = arith.constant 0 : i32
    return %arg0, %c0_i32 : i32, i32
  }
}

</mosaic_0001>

<llo_original>
// kernel: _dropout_mc_apply.1
$region0: #{_dropout_mc_apply.1}
  #allocation0 [shape = 'u32[]', space=smem, size = 0x4, offset = 0x4, fixed_abs, tag = 'smem constant byte address 0x4 - core index']
  #allocation1 [shape = 'u32[144,128]{1,0:T(1,128)}', space=vmem, size = 0x12000, scoped, tag = 'internal scratch']
  %s0 = inlined_call_operand.hbm [shape: f32[8,256], index: 0, kind: input, shape index: {}]
  %s1 = inlined_call_operand.vmem [shape: f32[1,256], index: 1, kind: input, shape index: {}]
  %s2 = inlined_call_operand.hbm [shape: f32[8,256], index: 2, kind: output, shape index: {}]
  %s3 = sld [smem:[#allocation0]]
  $region22: #{_dropout_mc_apply.1} parent=0
    _
  %s5 = ssub.s32 1, %s3
  %s6 = scalar_select 0, %s5, %s3
  $region1: #{_dropout_mc_apply.1} parent=0
    #allocation2 [shape = 'u8[8192]{0}', space=vmem, size = 0x2000, scoped, tag = 'input window, operand 0, single buffered']
    #allocation3 [shape = 's32[1]{0}', space=sflag, size = 0x4, scoped, tag = 'scoped memory for _dropout_mc_apply.1']
    #allocation4 [shape = 's32[1]{0}', space=sflag, size = 0x4, scoped, tag = 'scoped memory for _dropout_mc_apply.1']
    #allocation5 [shape = 'u8[8192]{0}', space=vmem, size = 0x2000, scoped, tag = 'output window, operand 0, single buffered']
    %7 = vsyncpa [#allocation3], 0
    %8 = vsyncpa [#allocation4], 0
    // Predicated region
    $region2: #{_dropout_mc_apply.1} parent=1 // pred_check
      _
    $region3: #{_dropout_mc_apply.1} parent=1 // pred_check_branch
      %10 = sbr.rel (0) target = $region5
    $region4: #{_dropout_mc_apply.1} parent=1 // pred_region
      %s12 = ssub.s32 256, 256
      %13 = vsyncadd [#allocation3], %s12
      %s15 = sshll.u32 [#allocation2], 4
      %s16 = int_to_ptr.vmem [resolvable:$true] %s15
      %18 = dma.hbm_to_vmem [thread:$0]  %s0, 256, %s16, [#allocation3]
    $region5: #{_dropout_mc_apply.1} parent=1 // pred_fallthru
      _
    // Predicated region
    $region6: #{_dropout_mc_apply.1} parent=1 // pred_check
      _
    $region7: #{_dropout_mc_apply.1} parent=1 // pred_check_branch
      %20 = sbr.rel (0) target = $region9
    $region8: #{_dropout_mc_apply.1} parent=1 // pred_region
      _
    $region9: #{_dropout_mc_apply.1} parent=1 // pred_fallthru
      _
    // Predicated region
    $region10: #{_dropout_mc_apply.1} parent=1 // pred_check
      _
    $region11: #{_dropout_mc_apply.1} parent=1 // pred_check_branch
      %22 = sbr.rel (0) target = $region13
    $region12: #{_dropout_mc_apply.1} parent=1 // pred_region
      %23 = dma.done [#allocation3], 256
    $region13: #{_dropout_mc_apply.1} parent=1 // pred_fallthru
      _
    %v24 = vld [vmem:[#allocation2] sm:$0xff]
    %v25 = vld [vmem:[#allocation2 + $0x8] sm:$0xff]
    %v26 = vld [vmem:[%s1] sm:$0x3]
    %v28 = vlaneseq
    %v29 = vshrl.u32 %v28, 7
    %v30 = vsub.s32 0, %v29
    %v31 = vrot.slane %v26, %v30
    %v32 = vlaneseq
    %v33 = vshrl.u32 %v32, 7
    %v34 = vsub.s32 1, %v33
    %v35 = vrot.slane %v26, %v34
    %v38 = vmul.f32 %v24, %v31
    %v39 = vmul.f32 %v25, %v35
    %40 = vst [vmem:[#allocation5] sm:$0xff] %v38
    %41 = vst [vmem:[#allocation5 + $0x8] sm:$0xff] %v39
    // Predicated region
    $region14: #{_dropout_mc_apply.1} parent=1 // pred_check
      _
    $region15: #{_dropout_mc_apply.1} parent=1 // pred_check_branch
      %43 = sbr.rel (0) target = $region17
    $region16: #{_dropout_mc_apply.1} parent=1 // pred_region
      %s45 = ssub.s32 256, 256
      %46 = vsyncadd [#allocation4], %s45
      %s48 = sshll.u32 [#allocation5], 4
      %s49 = int_to_ptr.vmem [resolvable:$true] %s48
      %51 = dma.vmem_to_hbm [thread:$0]  %s49, 256, %s2, [#allocation4]
    $region17: #{_dropout_mc_apply.1} parent=1 // pred_fallthru
      _
    // Predicated region
    $region18: #{_dropout_mc_apply.1} parent=1 // pred_check
      _
    $region19: #{_dropout_mc_apply.1} parent=1 // pred_check_branch
      %53 = sbr.rel (0) target = $region21
    $region20: #{_dropout_mc_apply.1} parent=1 // pred_region
      %54 = dma.done [#allocation4], 256
    $region21: #{_dropout_mc_apply.1} parent=1 // pred_fallthru
      _
    %55 = vsyncpa [#allocation3], 1
    %56 = vsyncpa [#allocation4], 1

</llo_original>
